<compile_context>
chip_gen: v7x
topology: tpu7x:2x2x1
jax: 0.10.0
libtpu: 0.0.40
codegen_flags: <defaults>
</compile_context>

<pallas_src>
import functools

import numpy as np
import jax
import jax.numpy as jnp
from jax import lax
from jax.experimental import pallas as pl
from jax.experimental.pallas import tpu as pltpu

VISION_MODALITIES = ("image", "video", "audio", "depth", "thermal")


# --------------------------------------------------------------- TPU generation
def _tpu_generation():
    try:
        kind = jax.devices()[0].device_kind.lower()
    except Exception:
        return 6
    for g in (7, 6, 5, 4, 3):
        if (f"v{g}" in kind) or (f"tpu{g}" in kind) or (f"tpu {g}" in kind):
            return g
    return 6


_GEN = _tpu_generation()
# v5e/v6e: 128 MiB physical VMEM -> large scoped budget + 512-row tiles.
# v7x:     64 MiB physical VMEM  -> tighter budget + 256-row tiles.
_VMEM_LIMIT = (100 << 20) if _GEN <= 6 else (48 << 20)
_ROW_TILE_TARGET = 512 if _GEN <= 6 else 256
_BF16_ACT = _GEN >= 6          # v6e/v7x have bf16 VPU/EUP paths; v5e does not


def _cp(sem):
    return pltpu.CompilerParams(dimension_semantics=sem,
                                vmem_limit_bytes=_VMEM_LIMIT)


def _row_tile(m, target=None):
    """Largest row tile <= target that divides m and is sublane (8) aligned."""
    target = _ROW_TILE_TARGET if target is None else target
    if m <= target:
        return m
    for t in range(min(target, m), 7, -1):
        if m % t == 0 and t % 8 == 0:
            return t
    return m   # callers pad the token axis to a multiple of 8, so this is rare


# ----------------------------------------------- single-buffered weight specs
_BUFFERED_WEIGHTS = None


def _buffered_weights_ok():
    """Probe whether pipeline_mode=pl.Buffered(1) works on this Pallas build.

    Grid-invariant weights do not benefit from double buffering; single
    buffering them halves weight VMEM (critical at CLIP-L sizes on v7x's
    64 MiB VMEM).  Fall back to default double buffering if unsupported.
    """
    global _BUFFERED_WEIGHTS
    if _BUFFERED_WEIGHTS is not None:
        return _BUFFERED_WEIGHTS
    try:
        def _k(x_ref, o_ref):
            o_ref[...] = x_ref[...] + 1.0

        spec = pl.BlockSpec((8, 128), lambda i: (0, 0),
                            pipeline_mode=pl.Buffered(1))
        out = pl.pallas_call(
            _k,
            out_shape=jax.ShapeDtypeStruct((8, 128), jnp.float32),
            grid=(2,),
            in_specs=[spec],
            out_specs=pl.BlockSpec((8, 128), lambda i: (0, 0)),
        )(jnp.zeros((8, 128), jnp.float32))
        jax.block_until_ready(out)
        _BUFFERED_WEIGHTS = True
    except Exception:
        _BUFFERED_WEIGHTS = False
    return _BUFFERED_WEIGHTS


def _weight_spec(block_shape, index_map):
    if _buffered_weights_ok():
        try:
            return pl.BlockSpec(block_shape, index_map,
                                pipeline_mode=pl.Buffered(1))
        except Exception:
            pass
    return pl.BlockSpec(block_shape, index_map)


def _swap_lead(x):
    """(a, b, c) -> (b, a, c) keeping the lane (last) dim in place."""
    f = getattr(pltpu, "einshape", None)
    if f is not None:
        try:
            return f("abc->bac", x)
        except Exception:
            pass
    return jnp.swapaxes(x, 0, 1)


# ---------------------------------------------------------------- Pallas kernels
def _add_ln_kernel(x_ref, pos_ref, g_ref, b_ref, o_ref):
    # fused positional-embedding add + pre-layernorm (vision towers).
    x = x_ref[0, 0].astype(jnp.float32) + pos_ref[0]
    mu = jnp.mean(x, axis=-1, keepdims=True)
    xc = x - mu
    var = jnp.mean(xc * xc, axis=-1, keepdims=True)
    o_ref[0, 0] = (xc * lax.rsqrt(var + 1e-5) * g_ref[0] + b_ref[0]).astype(o_ref.dtype)


def _attn_kernel(x_ref, g_ref, b_ref, qw_ref, qb_ref, ow_ref, ob_ref, o_ref,
                 *, num_heads, causal, valid_len):
    # fused LN1 + QKV projection + head-batched attention + out-proj + residual.
    # TODO(synk): for long video sequences add a query-tile grid axis (keep a
    # persistent qkv scratch across query tiles) to improve v7x load balance.
    S, D = x_ref.shape[2], x_ref.shape[3]
    H = num_heads
    Dh = D // H

    x = x_ref[0, 0].astype(jnp.float32)                         # (S, D)
    # LN1 (f32 statistics)
    mu = jnp.mean(x, axis=-1, keepdims=True)
    xc = x - mu
    var = jnp.mean(xc * xc, axis=-1, keepdims=True)
    hln = xc * lax.rsqrt(var + 1e-5) * g_ref[0] + b_ref[0]

    # one full-depth (S,D)x(D,3D) MXU matmul; 1/sqrt(Dh) already folded into
    # the q columns of qw/qb at parameter-prep time.
    qkv = jnp.dot(hln.astype(jnp.bfloat16), qw_ref[0],
                  preferred_element_type=jnp.float32) + qb_ref[0]
    qkv = qkv.astype(jnp.bfloat16)                              # (S, 3D)

    # head-major relayout: (S, H*Dh) -> (H, S, Dh)
    q = _swap_lead(qkv[:, :D].reshape(S, H, Dh))
    k = _swap_lead(qkv[:, D:2 * D].reshape(S, H, Dh))
    v = _swap_lead(qkv[:, 2 * D:].reshape(S, H, Dh))

    # head-batched QK^T (full MXU feed, no per-head Python loop)
    s = jnp.einsum('hqd,hkd->hqk', q, k, preferred_element_type=jnp.float32)

    col = lax.broadcasted_iota(jnp.int32, (S, S), 1)
    keep = col < valid_len                                      # mask padded keys
    if causal:
        row = lax.broadcasted_iota(jnp.int32, (S, S), 0)
        keep = keep & (col <= row)
    s = jnp.where(keep[None], s, jnp.float32(-1e30))

    s = s - jnp.max(s, axis=-1, keepdims=True)
    p = jnp.exp(s)
    # approx reciprocal (~1e-3 rel error) -- acceptable for inference.
    p = p * pl.reciprocal(jnp.sum(p, axis=-1, keepdims=True), approx=True)

    # head-batched PV, then merge heads and do ONE full-depth out projection.
    ctx = jnp.einsum('hqk,hkd->hqd', p.astype(jnp.bfloat16), v,
                     preferred_element_type=jnp.float32)        # (H, S, Dh)
    ctx = _swap_lead(ctx.astype(jnp.bfloat16)).reshape(S, D)    # (S, D) bf16
    y = jnp.dot(ctx, ow_ref[0], preferred_element_type=jnp.float32) + ob_ref[0]

    o_ref[0, 0] = (x + y).astype(o_ref.dtype)


def _mlp_kernel(x_ref, g_ref, b_ref, w1_ref, b1_ref, w2_ref, b2_ref, o_ref,
                *, bf16_act):
    # fused layernorm + fc1 + quick-GELU + fc2 + residual add.
    x = x_ref[0].astype(jnp.float32)
    mu = jnp.mean(x, axis=-1, keepdims=True)
    xc = x - mu
    var = jnp.mean(xc * xc, axis=-1, keepdims=True)
    h = xc * lax.rsqrt(var + 1e-5) * g_ref[0] + b_ref[0]
    h1 = jnp.dot(h.astype(jnp.bfloat16), w1_ref[0],
                 preferred_element_type=jnp.float32) + b1_ref[0]
    if bf16_act:                       # v6e/v7x: bf16 VPU/EUP; halves (tm,F) footprint
        h1 = h1.astype(jnp.bfloat16)
    h1 = h1 * jax.nn.sigmoid(1.702 * h1)          # quick-GELU (CLIP)
    h1 = h1.astype(jnp.bfloat16)
    h2 = jnp.dot(h1, w2_ref[0], preferred_element_type=jnp.float32) + b2_ref[0]
    o_ref[0] = (x + h2).astype(o_ref.dtype)


def _pool_proj_kernel(x_ref, g_ref, b_ref, w_ref, s_ref, o_ref):
    # fused post-layernorm + projection + L2 normalization + temperature scale.
    x = x_ref[0].astype(jnp.float32)
    mu = jnp.mean(x, axis=-1, keepdims=True)
    xc = x - mu
    var = jnp.mean(xc * xc, axis=-1, keepdims=True)
    h = xc * lax.rsqrt(var + 1e-5) * g_ref[0] + b_ref[0]
    y = jnp.dot(h.astype(jnp.bfloat16), w_ref[0], preferred_element_type=jnp.float32)
    inv = lax.rsqrt(jnp.sum(y * y, axis=-1, keepdims=True) + 1e-12)
    o_ref[0] = y * inv * s_ref[pl.program_id(0)]   # temperature scale from SMEM


# ------------------------------------------------------------------- wrappers
def grouped_add_ln(x, pos, g, b):
    G, B, S, D = x.shape
    return pl.pallas_call(
        _add_ln_kernel,
        out_shape=jax.ShapeDtypeStruct((G, B, S, D), jnp.bfloat16),
        grid=(G, B),
        in_specs=[pl.BlockSpec((1, 1, S, D), lambda gi, bi: (gi, bi, 0, 0)),
                  pl.BlockSpec((1, S, D), lambda gi, bi: (gi, 0, 0)),
                  pl.BlockSpec((1, 1, D), lambda gi, bi: (gi, 0, 0)),
                  pl.BlockSpec((1, 1, D), lambda gi, bi: (gi, 0, 0))],
        out_specs=pl.BlockSpec((1, 1, S, D), lambda gi, bi: (gi, bi, 0, 0)),
        compiler_params=_cp(("parallel", "parallel")),
    )(x, pos, g.reshape(G, 1, D), b.reshape(G, 1, D))


def grouped_attention(x, ln_g, ln_b, qkv_w, qkv_b, out_w, out_b,
                      *, num_heads, causal, valid_len):
    G, B, S, D = x.shape
    kern = functools.partial(_attn_kernel, num_heads=num_heads, causal=causal,
                             valid_len=valid_len)
    return pl.pallas_call(
        kern,
        out_shape=jax.ShapeDtypeStruct((G, B, S, D), jnp.bfloat16),
        grid=(G, B),
        in_specs=[pl.BlockSpec((1, 1, S, D), lambda gi, bi: (gi, bi, 0, 0)),
                  pl.BlockSpec((1, 1, D), lambda gi, bi: (gi, 0, 0)),
                  pl.BlockSpec((1, 1, D), lambda gi, bi: (gi, 0, 0)),
                  _weight_spec((1, D, 3 * D), lambda gi, bi: (gi, 0, 0)),
                  pl.BlockSpec((1, 1, 3 * D), lambda gi, bi: (gi, 0, 0)),
                  _weight_spec((1, D, D), lambda gi, bi: (gi, 0, 0)),
                  pl.BlockSpec((1, 1, D), lambda gi, bi: (gi, 0, 0))],
        out_specs=pl.BlockSpec((1, 1, S, D), lambda gi, bi: (gi, bi, 0, 0)),
        compiler_params=_cp(("parallel", "parallel")),
    )(x, ln_g.reshape(G, 1, D), ln_b.reshape(G, 1, D), qkv_w,
      qkv_b.reshape(G, 1, 3 * D), out_w, out_b.reshape(G, 1, D))


def grouped_mlp(x, g, b, w1, b1, w2, b2):
    G, M, D = x.shape
    F = w1.shape[-1]
    tm = _row_tile(M)
    kern = functools.partial(_mlp_kernel, bf16_act=_BF16_ACT)
    return pl.pallas_call(
        kern,
        out_shape=jax.ShapeDtypeStruct((G, M, D), jnp.bfloat16),
        grid=(G, M // tm),
        in_specs=[pl.BlockSpec((1, tm, D), lambda gi, ri: (gi, ri, 0)),
                  pl.BlockSpec((1, 1, D), lambda gi, ri: (gi, 0, 0)),
                  pl.BlockSpec((1, 1, D), lambda gi, ri: (gi, 0, 0)),
                  _weight_spec((1, D, F), lambda gi, ri: (gi, 0, 0)),
                  pl.BlockSpec((1, 1, F), lambda gi, ri: (gi, 0, 0)),
                  _weight_spec((1, F, D), lambda gi, ri: (gi, 0, 0)),
                  pl.BlockSpec((1, 1, D), lambda gi, ri: (gi, 0, 0))],
        out_specs=pl.BlockSpec((1, tm, D), lambda gi, ri: (gi, ri, 0)),
        compiler_params=_cp(("parallel", "parallel")),
    )(x, g.reshape(G, 1, D), b.reshape(G, 1, D),
      w1, b1.reshape(G, 1, F), w2, b2.reshape(G, 1, D))


def grouped_pool_proj(pooled, g, b, w, scale):
    G, B, D = pooled.shape
    P = w.shape[-1]
    return pl.pallas_call(
        _pool_proj_kernel,
        out_shape=jax.ShapeDtypeStruct((G, B, P), jnp.float32),
        grid=(G,),
        in_specs=[pl.BlockSpec((1, B, D), lambda gi: (gi, 0, 0)),
                  pl.BlockSpec((1, 1, D), lambda gi: (gi, 0, 0)),
                  pl.BlockSpec((1, 1, D), lambda gi: (gi, 0, 0)),
                  _weight_spec((1, D, P), lambda gi: (gi, 0, 0)),
                  pl.BlockSpec(memory_space=pltpu.MemorySpace.SMEM)],
        out_specs=pl.BlockSpec((1, B, P), lambda gi: (gi, 0, 0)),
        compiler_params=_cp(("parallel",)),
    )(pooled, g.reshape(G, 1, D), b.reshape(G, 1, D), w,
      scale.astype(jnp.float32).reshape(G))


# --------------------------------------------------------------- encoder pieces
def encoder_layer(x, p, *, causal, num_heads, valid_len):
    G, B, S, D = x.shape
    x = grouped_attention(x, p["ln1_g"], p["ln1_b"], p["qkv_w"], p["qkv_b"],
                          p["out_w"], p["out_b"], num_heads=num_heads,
                          causal=causal, valid_len=valid_len)
    x2 = grouped_mlp(x.reshape(G, B * S, D), p["ln2_g"], p["ln2_b"],
                     p["fc1_w"], p["fc1_b"], p["fc2_w"], p["fc2_b"])
    return x2.reshape(G, B, S, D)


def _pad_tokens(n):
    return int(-(-n // 8) * 8)


def vision_encode(pixel_values, p, cfg, no_temp):
    G, B, C, H, W = pixel_values.shape
    ps, D = cfg["patch"], cfg["hidden"]
    Hp, Wp = H // ps, W // ps
    n_tok = Hp * Wp + 1

    # Patch embedding as a strided conv (no host-side 7-D unfold relayout and
    # no duplicate bf16 cast).  Weight flatten order is (C, ps, ps) to match a
    # Conv2d weight reshaped as (D, C, ps, ps).reshape(D, -1).T.
    kern = p["patch_w"].reshape(G, C, ps, ps, D).transpose(0, 2, 3, 1, 4)  # HWIO
    emb = jax.vmap(lambda xi, ki: lax.conv_general_dilated(
        xi.astype(jnp.bfloat16), ki, window_strides=(ps, ps), padding="VALID",
        dimension_numbers=("NCHW", "HWIO", "NHWC"),
        preferred_element_type=jnp.float32))(pixel_values, kern)
    emb = emb.reshape(G, B, Hp * Wp, D).astype(jnp.bfloat16)

    cls = jnp.broadcast_to(p["cls"].reshape(G, 1, 1, D), (G, B, 1, D)).astype(jnp.bfloat16)
    x = jnp.concatenate([cls, emb], axis=2)                     # (G, B, n_tok, D)

    # Pad the token axis to a sublane multiple so the row-tiled kernels get
    # aligned tiles; padded keys are masked inside the attention kernel.
    s_pad = _pad_tokens(n_tok)
    pos = p["pos"]
    if s_pad != n_tok:
        x = jnp.pad(x, ((0, 0), (0, 0), (0, s_pad - n_tok), (0, 0)))
        pos = jnp.pad(pos, ((0, 0), (0, s_pad - n_tok), (0, 0)))

    x = grouped_add_ln(x, pos, p["ln_pre_g"], p["ln_pre_b"])    # pos-add + pre-LN
    x = encoder_layer(x, p["layer"], causal=False, num_heads=cfg["heads"],
                      valid_len=n_tok)

    pooled = x[:, :, 0, :]                                      # CLS token (G, B, D)
    scale = (jnp.ones((G,), jnp.float32) if no_temp
             else jnp.exp(p["logit_scale"]).reshape(G))
    return grouped_pool_proj(pooled, p["ln_post_g"], p["ln_post_b"],
                             p["proj_w"], scale)


def text_encode(input_ids, p, cfg):
    B, S = input_ids.shape
    # embedding lookup stays in JAX glue
    x = jnp.take(p["tok"], input_ids, axis=0) + p["pos"][None]
    x = x.astype(jnp.bfloat16)[None]                            # (1, B, S, D)
    s_pad = _pad_tokens(S)
    if s_pad != S:
        x = jnp.pad(x, ((0, 0), (0, 0), (0, s_pad - S), (0, 0)))
    lp = jax.tree_util.tree_map(lambda a: a[None], p["layer"])
    x = encoder_layer(x, lp, causal=True, num_heads=cfg["heads"], valid_len=S)
    # CLIP text pooling: token at argmax(input_ids) (assumes EOT carries the
    # largest id and padding uses smaller ids).
    eos = jnp.argmax(input_ids, axis=-1)
    pooled = x[0, jnp.arange(B), eos, :][None]                  # (1, B, D)
    scale = jnp.ones((1,), jnp.float32)                         # language: no temperature
    out = grouped_pool_proj(pooled, p["ln_final_g"][None], p["ln_final_b"][None],
                            p["proj_w"][None], scale)
    return out[0]


# --------------------------------------------------------- LanguageBind.forward
def languagebind_forward(params, inputs, cfg, no_temp=False):
    outputs = {}
    present = [k for k in VISION_MODALITIES if k in inputs]
    if present:
        vp = params["vision"]
        if len(present) != len(VISION_MODALITIES):
            idx = np.array([VISION_MODALITIES.index(k) for k in present])
            vp = jax.tree_util.tree_map(lambda a: a[idx], vp)
        pixels = jnp.stack([inputs[k]["pixel_values"] for k in present], axis=0)
        emb = vision_encode(pixels, vp, cfg, no_temp=no_temp)   # (G, B, P)
        for gi, k in enumerate(present):
            outputs[k] = emb[gi]
    if "language" in inputs:
        outputs["language"] = text_encode(inputs["language"]["input_ids"],
                                          params["language"], cfg)
    return outputs


# ---------------------------------------------------------------- parameter init
def init_params(cfg, seed=0):
    base = jax.random.PRNGKey(seed)
    counter = [0]
    BF = jnp.bfloat16

    def nrm(shape, std=0.02, dtype=jnp.float32):
        counter[0] += 1
        r = jax.random.normal(jax.random.fold_in(base, counter[0]), shape, jnp.float32)
        return (r * std).astype(dtype)

    D, P, F = cfg["hidden"], cfg["proj"], cfg["mlp"]
    C, ps, heads = cfg["channels"], cfg["patch"], cfg["heads"]
    n_tok = (cfg["image_size"] // ps) ** 2 + 1

    def layer_params():
        qkv_w = nrm((D, 3 * D), dtype=BF)
        qkv_b = jnp.zeros((3 * D,), jnp.float32)
        # Fold the 1/sqrt(Dh) attention scale into the q columns at parameter-
        # prep time (a real checkpoint loader must apply the same transform).
        qscale = 1.0 / float(np.sqrt(D // heads))
        qkv_w = qkv_w.at[:, :D].multiply(qscale)
        qkv_b = qkv_b.at[:D].multiply(qscale)
        return dict(
            ln1_g=jnp.ones((D,), jnp.float32), ln1_b=jnp.zeros((D,), jnp.float32),
            qkv_w=qkv_w, qkv_b=qkv_b,
            out_w=nrm((D, D), dtype=BF), out_b=jnp.zeros((D,), jnp.float32),
            ln2_g=jnp.ones((D,), jnp.float32), ln2_b=jnp.zeros((D,), jnp.float32),
            fc1_w=nrm((D, F), dtype=BF), fc1_b=jnp.zeros((F,), jnp.float32),
            fc2_w=nrm((F, D), dtype=BF), fc2_b=jnp.zeros((D,), jnp.float32),
        )

    def vision_tower():
        return dict(
            patch_w=nrm((C * ps * ps, D), dtype=BF),
            cls=nrm((D,)),
            pos=nrm((n_tok, D)),
            ln_pre_g=jnp.ones((D,), jnp.float32), ln_pre_b=jnp.zeros((D,), jnp.float32),
            layer=layer_params(),
            ln_post_g=jnp.ones((D,), jnp.float32), ln_post_b=jnp.zeros((D,), jnp.float32),
            proj_w=nrm((D, P), dtype=BF),
            logit_scale=jnp.asarray(np.log(1.0 / 0.07), jnp.float32),
        )

    towers = [vision_tower() for _ in VISION_MODALITIES]
    vision = jax.tree_util.tree_map(lambda *xs: jnp.stack(xs, axis=0), *towers)
    language = dict(
        tok=nrm((cfg["vocab"], D)),
        pos=nrm((cfg["seq"], D)),
        layer=layer_params(),
        ln_final_g=jnp.ones((D,), jnp.float32), ln_final_b=jnp.zeros((D,), jnp.float32),
        proj_w=nrm((D, P), dtype=BF),
    )
    return {"vision": vision, "language": language}


if __name__ == "__main__":
    cfg = dict(hidden=32, proj=16, mlp=64, heads=4,
               channels=3, patch=8, image_size=16, vocab=64, seq=8)
    params = init_params(cfg, seed=0)

    key = jax.random.PRNGKey(0)
    ks = jax.random.split(key, 6)
    B = 2
    inputs = {
        "image":   {"pixel_values": jax.random.normal(ks[0], (B, 3, 16, 16), jnp.float32)},
        "video":   {"pixel_values": jax.random.normal(ks[1], (B, 3, 16, 16), jnp.float32)},
        "audio":   {"pixel_values": jax.random.normal(ks[2], (B, 3, 16, 16), jnp.float32)},
        "depth":   {"pixel_values": jax.random.normal(ks[3], (B, 3, 16, 16), jnp.float32)},
        "thermal": {"pixel_values": jax.random.normal(ks[4], (B, 3, 16, 16), jnp.float32)},
        "language": {"input_ids": jax.random.randint(ks[5], (B, 8), 0, cfg["vocab"])},
    }

    outputs = languagebind_forward(params, inputs, cfg, no_temp=False)
    jax.block_until_ready(outputs)

    # sanity: every output is (B, proj_dim) and finite
    for k, v in outputs.items():
        assert v.shape == (B, cfg["proj"]), (k, v.shape)
        assert bool(jnp.all(jnp.isfinite(v))), k
    print("KERNEL_OK")
</pallas_src>

<mosaic_0001>
module attributes {stable_mosaic.version = 11 : i64} {
  func.func @_add_ln_kernel(%arg0: i32, %arg1: i32, %arg2: memref<1x1x8x32xbf16, #tpu.memory_space<vmem>>, %arg3: memref<1x8x32xf32, #tpu.memory_space<vmem>>, %arg4: memref<1x1x32xf32, #tpu.memory_space<vmem>>, %arg5: memref<1x1x32xf32, #tpu.memory_space<vmem>>, %arg6: memref<1x1x8x32xbf16, #tpu.memory_space<vmem>>) attributes {dimension_semantics = [#tpu.dimension_semantics<parallel>, #tpu.dimension_semantics<parallel>], iteration_bounds = array<i64: 5, 2>, scalar_prefetch = 0 : i64, scratch_operands = 0 : i64, tpu.core_type = #tpu.core_type<tc>, window_params = [{transform_indices = @transform_0, window_bounds = array<i64: 1, 1, 8, 32>}, {transform_indices = @transform_1, window_bounds = array<i64: 1, 8, 32>}, {transform_indices = @transform_2, window_bounds = array<i64: 1, 1, 32>}, {transform_indices = @transform_3, window_bounds = array<i64: 1, 1, 32>}, {transform_indices = @transform_4, window_bounds = array<i64: 1, 1, 8, 32>}]} {
    %c0 = arith.constant 0 : index
    %c0_0 = arith.constant 0 : index
    %c0_1 = arith.constant 0 : index
    %c0_2 = arith.constant 0 : index
    %0 = vector.load %arg2[%c0, %c0_0, %c0_1, %c0_2] : memref<1x1x8x32xbf16, #tpu.memory_space<vmem>>, vector<1x1x8x32xbf16>
    %1 = vector.shape_cast %0 : vector<1x1x8x32xbf16> to vector<8x32xbf16>
    %2 = arith.extf %1 : vector<8x32xbf16> to vector<8x32xf32>
    %c0_3 = arith.constant 0 : index
    %c0_4 = arith.constant 0 : index
    %c0_5 = arith.constant 0 : index
    %3 = vector.load %arg3[%c0_3, %c0_4, %c0_5] : memref<1x8x32xf32, #tpu.memory_space<vmem>>, vector<1x8x32xf32>
    %4 = vector.shape_cast %3 : vector<1x8x32xf32> to vector<8x32xf32>
    %5 = arith.addf %2, %4 : vector<8x32xf32>
    %cst = arith.constant dense<0.000000e+00> : vector<8xf32>
    %6 = vector.multi_reduction <add>, %5, %cst [1] : vector<8x32xf32> to vector<8xf32>
    %7 = vector.shape_cast %6 : vector<8xf32> to vector<8x1xf32>
    %cst_6 = arith.constant 3.200000e+01 : f32
    %8 = vector.broadcast %cst_6 : f32 to vector<8x1xf32>
    %9 = arith.divf %7, %8 : vector<8x1xf32>
    %10 = vector.broadcast %9 : vector<8x1xf32> to vector<8x32xf32>
    %11 = arith.subf %5, %10 : vector<8x32xf32>
    %12 = arith.mulf %11, %11 : vector<8x32xf32>
    %cst_7 = arith.constant dense<0.000000e+00> : vector<8xf32>
    %13 = vector.multi_reduction <add>, %12, %cst_7 [1] : vector<8x32xf32> to vector<8xf32>
    %14 = vector.shape_cast %13 : vector<8xf32> to vector<8x1xf32>
    %cst_8 = arith.constant 3.200000e+01 : f32
    %15 = vector.broadcast %cst_8 : f32 to vector<8x1xf32>
    %16 = arith.divf %14, %15 : vector<8x1xf32>
    %cst_9 = arith.constant 9.99999974E-6 : f32
    %17 = vector.broadcast %cst_9 : f32 to vector<8x1xf32>
    %18 = arith.addf %16, %17 : vector<8x1xf32>
    %19 = math.rsqrt %18 : vector<8x1xf32>
    %20 = vector.broadcast %19 : vector<8x1xf32> to vector<8x32xf32>
    %21 = arith.mulf %11, %20 : vector<8x32xf32>
    %c0_10 = arith.constant 0 : index
    %c0_11 = arith.constant 0 : index
    %c0_12 = arith.constant 0 : index
    %22 = vector.load %arg4[%c0_10, %c0_11, %c0_12] : memref<1x1x32xf32, #tpu.memory_space<vmem>>, vector<1x1x32xf32>
    %23 = vector.shape_cast %22 : vector<1x1x32xf32> to vector<1x32xf32>
    %24 = vector.broadcast %23 : vector<1x32xf32> to vector<8x32xf32>
    %25 = arith.mulf %21, %24 : vector<8x32xf32>
    %c0_13 = arith.constant 0 : index
    %c0_14 = arith.constant 0 : index
    %c0_15 = arith.constant 0 : index
    %26 = vector.load %arg5[%c0_13, %c0_14, %c0_15] : memref<1x1x32xf32, #tpu.memory_space<vmem>>, vector<1x1x32xf32>
    %27 = vector.shape_cast %26 : vector<1x1x32xf32> to vector<1x32xf32>
    %28 = vector.broadcast %27 : vector<1x32xf32> to vector<8x32xf32>
    %29 = arith.addf %25, %28 : vector<8x32xf32>
    %30 = arith.truncf %29 : vector<8x32xf32> to vector<8x32xbf16>
    %c0_16 = arith.constant 0 : index
    %c0_17 = arith.constant 0 : index
    %c0_18 = arith.constant 0 : index
    %c0_19 = arith.constant 0 : index
    %31 = vector.load %arg6[%c0_16, %c0_17, %c0_18, %c0_19] : memref<1x1x8x32xbf16, #tpu.memory_space<vmem>>, vector<1x1x8x32xbf16>
    %32 = vector.shape_cast %31 : vector<1x1x8x32xbf16> to vector<8x32xbf16>
    %33 = vector.shape_cast %30 : vector<8x32xbf16> to vector<1x1x8x32xbf16>
    tpu.vector_store %arg6[%c0_16, %c0_17, %c0_18, %c0_19], %33 {strides = array<i32>} : memref<1x1x8x32xbf16, #tpu.memory_space<vmem>>, vector<1x1x8x32xbf16>,
    return
  }
  func.func @transform_0(%arg0: i32, %arg1: i32) -> (i32, i32, i32, i32) {
    %c0_i32 = arith.constant 0 : i32
    %c0_i32_0 = arith.constant 0 : i32
    %c0_i32_1 = arith.constant 0 : i32
    return %arg0, %arg1, %c0_i32, %c0_i32_0 : i32, i32, i32, i32
  }
  func.func @transform_1(%arg0: i32, %arg1: i32) -> (i32, i32, i32) {
    %c0_i32 = arith.constant 0 : i32
    %c0_i32_0 = arith.constant 0 : i32
    %c0_i32_1 = arith.constant 0 : i32
    return %arg0, %c0_i32, %c0_i32_0 : i32, i32, i32
  }
  func.func @transform_2(%arg0: i32, %arg1: i32) -> (i32, i32, i32) {
    %c0_i32 = arith.constant 0 : i32
    %c0_i32_0 = arith.constant 0 : i32
    %c0_i32_1 = arith.constant 0 : i32
    return %arg0, %c0_i32, %c0_i32_0 : i32, i32, i32
  }
  func.func @transform_3(%arg0: i32, %arg1: i32) -> (i32, i32, i32) {
    %c0_i32 = arith.constant 0 : i32
    %c0_i32_0 = arith.constant 0 : i32
    %c0_i32_1 = arith.constant 0 : i32
    return %arg0, %c0_i32, %c0_i32_0 : i32, i32, i32
  }
  func.func @transform_4(%arg0: i32, %arg1: i32) -> (i32, i32, i32, i32) {
    %c0_i32 = arith.constant 0 : i32
    %c0_i32_0 = arith.constant 0 : i32
    %c0_i32_1 = arith.constant 0 : i32
    return %arg0, %arg1, %c0_i32, %c0_i32_0 : i32, i32, i32, i32
  }
}

</mosaic_0001>

<llo_original>
// kernel: tpu_custom_call.1
$region0: #{tpu_custom_call.1}
  #allocation0 [shape = 'u32[]', space=smem, size = 0x4, offset = 0x4, fixed_abs, tag = 'smem constant byte address 0x4 - core index']
  #allocation1 [shape = 'u32[144,128]{1,0:T(1,128)}', space=vmem, size = 0x12000, scoped, tag = 'internal scratch']
  %s0 = inlined_call_operand.hbm [shape: bf16[5,2,8,32], index: 0, kind: input, shape index: {}]
  %s1 = inlined_call_operand.hbm [shape: f32[5,8,32], index: 1, kind: input, shape index: {}]
  %s2 = inlined_call_operand.hbm [shape: f32[5,1,32], index: 2, kind: input, shape index: {}]
  %s3 = inlined_call_operand.hbm [shape: f32[5,1,32], index: 3, kind: input, shape index: {}]
  %s4 = inlined_call_operand.hbm [shape: bf16[5,2,8,32], index: 4, kind: output, shape index: {}]
  %s5 = sld [smem:[#allocation0]]
  $region65: #{tpu_custom_call.1} parent=0
    _
  %s7 = ssub.s32 1, %s5
  %s8 = scalar_select 0, %s7, %s5
  $region1: #{tpu_custom_call.1} parent=0
    #allocation2 [shape = 'u8[4096]{0}', space=vmem, size = 0x1000, scoped, tag = 'input window, operand 0']
    #allocation3 [shape = 's32[2]{0}', space=sflag, size = 0x8, scoped, tag = 'scoped memory for tpu_custom_call.1']
    #allocation4 [shape = 's32[2]{0}', space=sflag, size = 0x8, scoped, tag = 'scoped memory for tpu_custom_call.1']
    #allocation5 [shape = 'u8[8192]{0}', space=vmem, size = 0x2000, scoped, tag = 'input window, operand 1']
    #allocation6 [shape = 's32[2]{0}', space=sflag, size = 0x8, scoped, tag = 'scoped memory for tpu_custom_call.1']
    #allocation7 [shape = 'u8[1024]{0}', space=vmem, size = 0x400, scoped, tag = 'input window, operand 2']
    #allocation8 [shape = 'u8[1024]{0}', space=vmem, size = 0x400, scoped, tag = 'input window, operand 3']
    #allocation9 [shape = 's32[2]{0}', space=sflag, size = 0x8, scoped, tag = 'scoped memory for tpu_custom_call.1']
    #allocation10 [shape = 'u8[4096]{0}', space=vmem, size = 0x1000, scoped, tag = 'output window, operand 0']
    %9 = vsyncpa [#allocation3], 0
    %s10 = scalar_lea.sflag [#allocation3], 1
    %11 = vsyncpa %s10, 0
    %12 = vsyncpa [#allocation6], 0
    %s13 = scalar_lea.sflag [#allocation6], 1
    %14 = vsyncpa %s13, 0
    %15 = vsyncpa [#allocation9], 0
    %s16 = scalar_lea.sflag [#allocation9], 1
    %17 = vsyncpa %s16, 0
    %18 = vsyncpa [#allocation4], 0
    %s19 = scalar_lea.sflag [#allocation4], 1
    %20 = vsyncpa %s19, 0
    loop: start=0, step=1, limit=12
    $region2: #{tpu_custom_call.1} parent=1 // loop_pre_header
      _
    $region3: #{tpu_custom_call.1} parent=1 // loop_header
      %s22 = sphi 0, %s26
      %p23 = scmp.ge.s32.totalorder %s22, 12
      %s29 = sphi 0, %s41
      %s30 = sphi 0, %s37
      %s31 = sphi 0, %s29
      %s32 = sphi 0, %s30
      %s33 = sphi 0, %s31
      %s34 = sphi 0, %s32
      %s46 = sphi 0, %s48
      %s49 = sphi 0, %s46
      %s50 = sphi 0, %s49
      %s66 = sphi 0, %s50
      %s72 = sphi 0, %s74
      %s75 = sphi 0, %s72
      %s76 = sphi 0, %s75
      %s92 = sphi 0, %s76
      %s98 = sphi 0, %s100
      %s101 = sphi 0, %s98
      %s102 = sphi 0, %s101
      %s118 = sphi 0, %s102
      %s124 = sphi 0, %s126
      %s127 = sphi 0, %s124
      %s128 = sphi 0, %s127
      %s144 = sphi 0, %s128
      %s152 = sphi 0, %s154
      %s155 = sphi 0, %s152
      %s156 = sphi 0, %s155
      %s172 = sphi 0, %s156
    $region4: #{tpu_custom_call.1} parent=1 // loop_header_branch
      %25 = sbr.rel (%p23) target = $region8
    $region5: #{tpu_custom_call.1} parent=1 // loop_body
      %s27 = ssub.s32 %s22, 1
      %s28 = ssub.s32 %s22, 2
      %s35 = sadd.s32 1, %s30
      %p36 = scmp.ge.s32.totalorder %s35, 2
      %s37 = scalar_select %p36, 0, %s35
      %s38 = sadd.s32 1, %s29
      %s39 = scalar_select %p36, %s38, %s29
      %p40 = scmp.ge.s32.totalorder %s39, 5
      %s41 = scalar_select %p40, 0, %s39
      %s42 = ssub.s32 %s29, %s41
      %s43 = ssub.s32 %s30, %s37
      %s44 = sor.u32 %s42, %s43
      %p45 = scmp.eq.s32.totalorder %s44, 0
      %s47 = sadd.s32 %s46, 1
      %s48 = scalar_select %p45, %s46, %s47
      %p51 = pneg %p45
      %p52 = scmp.eq.s32.totalorder %s22, 9
      %p53 = por %p51, %p52
      %p54 = scmp.ne.s32.totalorder %s46, %s49
      %p55 = scmp.eq.s32.totalorder %s22, 0
      %p56 = por %p54, %p55
      %p57 = scmp.ne.s32.totalorder %s46, %s49
      %p58 = scmp.eq.s32.totalorder %s27, 9
      %p59 = por %p57, %p58
      %p60 = scmp.ne.s32.totalorder %s49, %s50
      %p61 = scmp.eq.s32.totalorder %s27, 0
      %p62 = por %p60, %p61
      %p63 = scmp.ne.s32.totalorder %s49, %s50
      %p64 = scmp.eq.s32.totalorder %s28, 9
      %p65 = por %p63, %p64
      %p67 = scmp.ne.s32.totalorder %s50, %s66
      %p68 = scmp.eq.s32.totalorder %s28, 0
      %p69 = por %p67, %p68
      %s70 = ssub.s32 %s29, %s41
      %p71 = scmp.eq.s32.totalorder %s70, 0
      %s73 = sadd.s32 %s72, 1
      %s74 = scalar_select %p71, %s72, %s73
      %p77 = pneg %p71
      %p78 = scmp.eq.s32.totalorder %s22, 9
      %p79 = por %p77, %p78
      %p80 = scmp.ne.s32.totalorder %s72, %s75
      %p81 = scmp.eq.s32.totalorder %s22, 0
      %p82 = por %p80, %p81
      %p83 = scmp.ne.s32.totalorder %s72, %s75
      %p84 = scmp.eq.s32.totalorder %s27, 9
      %p85 = por %p83, %p84
      %p86 = scmp.ne.s32.totalorder %s75, %s76
      %p87 = scmp.eq.s32.totalorder %s27, 0
      %p88 = por %p86, %p87
      %p89 = scmp.ne.s32.totalorder %s75, %s76
      %p90 = scmp.eq.s32.totalorder %s28, 9
      %p91 = por %p89, %p90
      %p93 = scmp.ne.s32.totalorder %s76, %s92
      %p94 = scmp.eq.s32.totalorder %s28, 0
      %p95 = por %p93, %p94
      %s96 = ssub.s32 %s29, %s41
      %p97 = scmp.eq.s32.totalorder %s96, 0
      %s99 = sadd.s32 %s98, 1
      %s100 = scalar_select %p97, %s98, %s99
      %p103 = pneg %p97
      %p104 = scmp.eq.s32.totalorder %s22, 9
      %p105 = por %p103, %p104
      %p106 = scmp.ne.s32.totalorder %s98, %s101
      %p107 = scmp.eq.s32.totalorder %s22, 0
      %p108 = por %p106, %p107
      %p109 = scmp.ne.s32.totalorder %s98, %s101
      %p110 = scmp.eq.s32.totalorder %s27, 9
      %p111 = por %p109, %p110
      %p112 = scmp.ne.s32.totalorder %s101, %s102
      %p113 = scmp.eq.s32.totalorder %s27, 0
      %p114 = por %p112, %p113
      %p115 = scmp.ne.s32.totalorder %s101, %s102
      %p116 = scmp.eq.s32.totalorder %s28, 9
      %p117 = por %p115, %p116
      %p119 = scmp.ne.s32.totalorder %s102, %s118
      %p120 = scmp.eq.s32.totalorder %s28, 0
      %p121 = por %p119, %p120
      %s122 = ssub.s32 %s29, %s41
      %p123 = scmp.eq.s32.totalorder %s122, 0
      %s125 = sadd.s32 %s124, 1
      %s126 = scalar_select %p123, %s124, %s125
      %p129 = pneg %p123
      %p130 = scmp.eq.s32.totalorder %s22, 9
      %p131 = por %p129, %p130
      %p132 = scmp.ne.s32.totalorder %s124, %s127
      %p133 = scmp.eq.s32.totalorder %s22, 0
      %p134 = por %p132, %p133
      %p135 = scmp.ne.s32.totalorder %s124, %s127
      %p136 = scmp.eq.s32.totalorder %s27, 9
      %p137 = por %p135, %p136
      %p138 = scmp.ne.s32.totalorder %s127, %s128
      %p139 = scmp.eq.s32.totalorder %s27, 0
      %p140 = por %p138, %p139
      %p141 = scmp.ne.s32.totalorder %s127, %s128
      %p142 = scmp.eq.s32.totalorder %s28, 9
      %p143 = por %p141, %p142
      %p145 = scmp.ne.s32.totalorder %s128, %s144
      %p146 = scmp.eq.s32.totalorder %s28, 0
      %p147 = por %p145, %p146
      %s148 = ssub.s32 %s29, %s41
      %s149 = ssub.s32 %s30, %s37
      %s150 = sor.u32 %s148, %s149
      %p151 = scmp.eq.s32.totalorder %s150, 0
      %s153 = sadd.s32 %s152, 1
      %s154 = scalar_select %p151, %s152, %s153
      %p157 = pneg %p151
      %p158 = scmp.eq.s32.totalorder %s22, 9
      %p159 = por %p157, %p158
      %p160 = scmp.ne.s32.totalorder %s152, %s155
      %p161 = scmp.eq.s32.totalorder %s22, 0
      %p162 = por %p160, %p161
      %p163 = scmp.ne.s32.totalorder %s152, %s155
      %p164 = scmp.eq.s32.totalorder %s27, 9
      %p165 = por %p163, %p164
      %p166 = scmp.ne.s32.totalorder %s155, %s156
      %p167 = scmp.eq.s32.totalorder %s27, 0
      %p168 = por %p166, %p167
      %p169 = scmp.ne.s32.totalorder %s155, %s156
      %p170 = scmp.eq.s32.totalorder %s28, 9
      %p171 = por %p169, %p170
      %p173 = scmp.ne.s32.totalorder %s156, %s172
      %p174 = scmp.eq.s32.totalorder %s28, 0
      %p175 = por %p173, %p174
      %p176 = scmp.le.s32.totalorder 1, %s22
      %p177 = scmp.lt.s32.totalorder %s22, 11
      %p178 = pnand %p176, %p177
      %p179 = pneg %p178
      // Predicated region
      $region9: #{tpu_custom_call.1} parent=5 // pred_check
        _
      $region10: #{tpu_custom_call.1} parent=5 // pred_check_branch
        %181 = sbr.rel (%p178) target = $region12
      $region11: #{tpu_custom_call.1} parent=5 // pred_region
        %s182 = ssub.s32 %s22, 1
      $region12: #{tpu_custom_call.1} parent=5 // pred_fallthru
        _
      %p183 = scmp.lt.s32.totalorder %s22, 10
      // Predicated region
      $region13: #{tpu_custom_call.1} parent=5 // pred_check
        %p184 = pneg %p183
      $region14: #{tpu_custom_call.1} parent=5 // pred_check_branch
        %186 = sbr.rel (%p184) target = $region16
      $region15: #{tpu_custom_call.1} parent=5 // pred_region
        // Predicated region
        $region17: #{tpu_custom_call.1} parent=15 // pred_check
          %p187 = pneg %p56
        $region18: #{tpu_custom_call.1} parent=15 // pred_check_branch
          %189 = sbr.rel (%p187) target = $region20
        $region19: #{tpu_custom_call.1} parent=15 // pred_region
          %s190 = sand.u32 %s46, 1
          %s191 = scalar_lea.sflag [#allocation3], %s190
          %s192 = sand.u32 %s46, 1
          %s193 = smul.addr %s192, 4
          %s194 = scalar_lea.vmem [#allocation2], %s193
          %s196 = ssub.s32 64, 64
          %197 = vsyncadd %s191, %s196
          %s198 = smul.addr %s29, 2
          %s199 = sadd.s32 %s30, %s198
          %s200 = smul.addr %s199, 64
          %s201 = scalar_lea.hbm %s0, %s200
          %s203 = sshll.u32 %s194, 4
          %s204 = int_to_ptr.vmem [resolvable:$true] %s203
          %206 = dma.hbm_to_vmem [thread:$0]  %s201, 64, %s204, %s191
        $region20: #{tpu_custom_call.1} parent=15 // pred_fallthru
          _
        // Predicated region
        $region21: #{tpu_custom_call.1} parent=15 // pred_check
          %p207 = pneg %p82
        $region22: #{tpu_custom_call.1} parent=15 // pred_check_branch
          %209 = sbr.rel (%p207) target = $region24
        $region23: #{tpu_custom_call.1} parent=15 // pred_region
          %s210 = sand.u32 %s22, 1
          %s211 = scalar_lea.sflag [#allocation6], %s210
          %s212 = sand.u32 %s72, 1
          %s213 = smul.addr %s212, 8
          %s214 = scalar_lea.vmem [#allocation5], %s213
          %s216 = ssub.s32 128, 128
          %217 = vsyncadd %s211, %s216
          %s218 = smul.addr %s29, 128
          %s219 = scalar_lea.hbm %s1, %s218
          %s221 = sshll.u32 %s214, 4
          %s222 = int_to_ptr.vmem [resolvable:$true] %s221
          %224 = dma.hbm_to_vmem [thread:$0]  %s219, 128, %s222, %s211
        $region24: #{tpu_custom_call.1} parent=15 // pred_fallthru
          _
        // Predicated region
        $region25: #{tpu_custom_call.1} parent=15 // pred_check
          %p225 = pneg %p108
        $region26: #{tpu_custom_call.1} parent=15 // pred_check_branch
          %227 = sbr.rel (%p225) target = $region28
        $region27: #{tpu_custom_call.1} parent=15 // pred_region
          %s228 = sand.u32 %s22, 1
          %s229 = scalar_lea.sflag [#allocation6], %s228
          %s230 = sand.u32 %s98, 1
          %s231 = scalar_lea.vmem [#allocation7], %s230
          %s233 = ssub.s32 16, 16
          %234 = vsyncadd %s229, %s233
          %s235 = smul.addr %s29, 16
          %s236 = scalar_lea.hbm %s2, %s235
          %s238 = sshll.u32 %s231, 4
          %s239 = int_to_ptr.vmem [resolvable:$true] %s238
          %241 = dma.hbm_to_vmem [thread:$0]  %s236, 16, %s239, %s229
        $region28: #{tpu_custom_call.1} parent=15 // pred_fallthru
          _
        // Predicated region
        $region29: #{tpu_custom_call.1} parent=15 // pred_check
          %p242 = pneg %p134
        $region30: #{tpu_custom_call.1} parent=15 // pred_check_branch
          %244 = sbr.rel (%p242) target = $region32
        $region31: #{tpu_custom_call.1} parent=15 // pred_region
          %s245 = sand.u32 %s124, 1
          %s246 = scalar_lea.sflag [#allocation9], %s245
          %s247 = sand.u32 %s124, 1
          %s248 = scalar_lea.vmem [#allocation8], %s247
          %s250 = ssub.s32 16, 16
          %251 = vsyncadd %s246, %s250
          %s252 = smul.addr %s29, 16
          %s253 = scalar_lea.hbm %s3, %s252
          %s255 = sshll.u32 %s248, 4
          %s256 = int_to_ptr.vmem [resolvable:$true] %s255
          %258 = dma.hbm_to_vmem [thread:$0]  %s253, 16, %s256, %s246
        $region32: #{tpu_custom_call.1} parent=15 // pred_fallthru
          _
      $region16: #{tpu_custom_call.1} parent=5 // pred_fallthru
        _
      %p259 = scmp.le.s32.totalorder 1, %s22
      %p260 = scmp.lt.s32.totalorder %s22, 11
      %p261 = pnand %p259, %p260
      %p262 = pneg %p261
      // Predicated region
      $region33: #{tpu_custom_call.1} parent=5 // pred_check
        _
      $region34: #{tpu_custom_call.1} parent=5 // pred_check_branch
        %264 = sbr.rel (%p261) target = $region36
      $region35: #{tpu_custom_call.1} parent=5 // pred_region
        %s265 = ssub.s32 %s22, 1
        %s266 = sand.u32 %s49, 1
        %s267 = scalar_lea.sflag [#allocation3], %s266
        %s268 = sand.u32 %s49, 1
        %s269 = smul.addr %s268, 4
        %s270 = scalar_lea.vmem [#allocation2], %s269
        // Predicated region
        $region37: #{tpu_custom_call.1} parent=35 // pred_check
          %p271 = pneg %p62
        $region38: #{tpu_custom_call.1} parent=35 // pred_check_branch
          %273 = sbr.rel (%p271) target = $region40
        $region39: #{tpu_custom_call.1} parent=35 // pred_region
          %274 = dma.done %s267, 64
        $region40: #{tpu_custom_call.1} parent=35 // pred_fallthru
          _
        %s275 = sand.u32 %s27, 1
        %s276 = scalar_lea.sflag [#allocation6], %s275
        %s277 = sand.u32 %s75, 1
        %s278 = smul.addr %s277, 8
        %s279 = scalar_lea.vmem [#allocation5], %s278
        // Predicated region
        $region41: #{tpu_custom_call.1} parent=35 // pred_check
          %p280 = pneg %p88
        $region42: #{tpu_custom_call.1} parent=35 // pred_check_branch
          %282 = sbr.rel (%p280) target = $region44
        $region43: #{tpu_custom_call.1} parent=35 // pred_region
          %283 = dma.done %s276, 128
        $region44: #{tpu_custom_call.1} parent=35 // pred_fallthru
          _
        %s284 = sand.u32 %s27, 1
        %s285 = scalar_lea.sflag [#allocation6], %s284
        %s286 = sand.u32 %s101, 1
        %s287 = scalar_lea.vmem [#allocation7], %s286
        // Predicated region
        $region45: #{tpu_custom_call.1} parent=35 // pred_check
          %p288 = pneg %p114
        $region46: #{tpu_custom_call.1} parent=35 // pred_check_branch
          %290 = sbr.rel (%p288) target = $region48
        $region47: #{tpu_custom_call.1} parent=35 // pred_region
          %291 = dma.done %s285, 16
        $region48: #{tpu_custom_call.1} parent=35 // pred_fallthru
          _
        %s292 = sand.u32 %s127, 1
        %s293 = scalar_lea.sflag [#allocation9], %s292
        %s294 = sand.u32 %s127, 1
        %s295 = scalar_lea.vmem [#allocation8], %s294
        // Predicated region
        $region49: #{tpu_custom_call.1} parent=35 // pred_check
          %p296 = pneg %p140
        $region50: #{tpu_custom_call.1} parent=35 // pred_check_branch
          %298 = sbr.rel (%p296) target = $region52
        $region51: #{tpu_custom_call.1} parent=35 // pred_region
          %299 = dma.done %s293, 16
        $region52: #{tpu_custom_call.1} parent=35 // pred_fallthru
          _
        %s300 = sand.u32 %s49, 1
        %s301 = scalar_lea.sflag [#allocation3], %s300
        %s302 = sand.u32 %s49, 1
        %s303 = smul.addr %s302, 4
        %s304 = scalar_lea.vmem [#allocation2], %s303
        %p305 = pneg %p62
        %p306 = pneg %p59
        %s307 = sand.u32 %s27, 1
        %s308 = scalar_lea.sflag [#allocation6], %s307
        %s309 = sand.u32 %s75, 1
        %s310 = smul.addr %s309, 8
        %s311 = scalar_lea.vmem [#allocation5], %s310
        %p312 = pneg %p88
        %p313 = pneg %p85
        %s314 = sand.u32 %s27, 1
        %s315 = scalar_lea.sflag [#allocation6], %s314
        %s316 = sand.u32 %s101, 1
        %s317 = scalar_lea.vmem [#allocation7], %s316
        %p318 = pneg %p114
        %p319 = pneg %p111
        %s320 = sand.u32 %s127, 1
        %s321 = scalar_lea.sflag [#allocation9], %s320
        %s322 = sand.u32 %s127, 1
        %s323 = scalar_lea.vmem [#allocation8], %s322
        %p324 = pneg %p140
        %p325 = pneg %p137
        %p326 = pneg %p168
        %p327 = pneg %p165
        %s328 = sand.u32 %s155, 1
        %s329 = scalar_lea.sflag [#allocation4], %s328
        %s330 = sand.u32 %s155, 1
        %s331 = smul.addr %s330, 4
        %s332 = scalar_lea.vmem [#allocation10], %s331
        %v333 = vld [vmem:[%s270] sm:$0xf]
        %v334 = vunpack.c.l.bf16 %v333
        %v335 = vld [vmem:[%s279] sm:$0xff]
        %v336 = vadd.f32 %v334, %v335
        %vm337 = vcmask 261120
        %v338 = vsel %vm337, %v336, 0.0
        %339 = vadd.xlane.f32.xlu0 %v338
        %v340 = vpop.xlane.xlu0 %339
        %v341 = vrcp.pop 32.0
        %v342 = vmul.f32 %v340, %v341
        %v343 = vsub.f32 %v336, %v342
        %v344 = vmul.f32 %v343, %v343
        %v345 = vsel %vm337, %v344, 0.0
        %346 = vadd.xlane.f32.xlu0 %v345
        %v347 = vpop.xlane.xlu0 %346
        %v348 = vmul.f32 %v347, %v341
        %v349 = vadd.f32 %v348, 1e-05
        %v350 = vrsqrt.pop %v349
        %v351 = vmul.f32 %v343, %v350
        %v352 = vld [vmem:[%s287] sm:$0x1]
        %v354 = vlaneseq
        %v355 = vshrl.u32 %v354, 7
        %v356 = vsub.s32 0, %v355
        %v357 = vrot.slane %v352, %v356
        %v359 = vmul.f32 %v351, %v357
        %v360 = vld [vmem:[%s295] sm:$0x1]
        %v362 = vlaneseq
        %v363 = vshrl.u32 %v362, 7
        %v364 = vsub.s32 0, %v363
        %v365 = vrot.slane %v360, %v364
        %v367 = vadd.f32 %v359, %v365
        %v368 = vpack.c.bf16 %v367, %v367
        %vm369 = vcmask 257024
        %370 = vst.msk [vmem:[%s332] sm:$0xf] %vm369, %v368
        %s371 = sand.u32 %s155, 1
        %s372 = scalar_lea.sflag [#allocation4], %s371
        %s373 = sand.u32 %s155, 1
        %s374 = smul.addr %s373, 4
        %s375 = scalar_lea.vmem [#allocation10], %s374
        // Predicated region
        $region53: #{tpu_custom_call.1} parent=35 // pred_check
          %p376 = pneg %p165
        $region54: #{tpu_custom_call.1} parent=35 // pred_check_branch
          %378 = sbr.rel (%p376) target = $region56
        $region55: #{tpu_custom_call.1} parent=35 // pred_region
          %s380 = ssub.s32 64, 64
          %381 = vsyncadd %s372, %s380
          %s382 = smul.addr %s31, 2
          %s383 = sadd.s32 %s32, %s382
          %s384 = smul.addr %s383, 64
          %s385 = scalar_lea.hbm %s4, %s384
          %s387 = sshll.u32 %s375, 4
          %s388 = int_to_ptr.vmem [resolvable:$true] %s387
          %390 = dma.vmem_to_hbm [thread:$0]  %s388, 64, %s385, %s372
        $region56: #{tpu_custom_call.1} parent=35 // pred_fallthru
          _
      $region36: #{tpu_custom_call.1} parent=5 // pred_fallthru
        _
      %p391 = scmp.le.s32.totalorder 2, %s22
      // Predicated region
      $region57: #{tpu_custom_call.1} parent=5 // pred_check
        %p392 = pneg %p391
      $region58: #{tpu_custom_call.1} parent=5 // pred_check_branch
        %394 = sbr.rel (%p392) target = $region60
      $region59: #{tpu_custom_call.1} parent=5 // pred_region
        %s395 = ssub.s32 %s22, 2
        // Predicated region
        $region61: #{tpu_custom_call.1} parent=59 // pred_check
          %p396 = pneg %p171
        $region62: #{tpu_custom_call.1} parent=59 // pred_check_branch
          %398 = sbr.rel (%p396) target = $region64
        $region63: #{tpu_custom_call.1} parent=59 // pred_region
          %s399 = sand.u32 %s156, 1
          %s400 = scalar_lea.sflag [#allocation4], %s399
          %s401 = sand.u32 %s156, 1
          %s402 = smul.addr %s401, 4
          %s403 = scalar_lea.vmem [#allocation10], %s402
          %404 = dma.done %s400, 64
        $region64: #{tpu_custom_call.1} parent=59 // pred_fallthru
          _
      $region60: #{tpu_custom_call.1} parent=5 // pred_fallthru
        _
    $region6: #{tpu_custom_call.1} parent=1 // loop_footer
      %s26 = sadd.s32 1, %s22
    $region7: #{tpu_custom_call.1} parent=1 // loop_footer_branch
      %21 = sbr.rel target = $region3
    $region8: #{tpu_custom_call.1} parent=1 // loop_exit
      _
    %405 = vsyncpa [#allocation3], 1
    %s406 = scalar_lea.sflag [#allocation3], 1
    %407 = vsyncpa %s406, 1
    %408 = vsyncpa [#allocation6], 1
    %s409 = scalar_lea.sflag [#allocation6], 1
    %410 = vsyncpa %s409, 1
    %411 = vsyncpa [#allocation9], 1
    %s412 = scalar_lea.sflag [#allocation9], 1
    %413 = vsyncpa %s412, 1
    %414 = vsyncpa [#allocation4], 1
    %s415 = scalar_lea.sflag [#allocation4], 1
    %416 = vsyncpa %s415, 1

</llo_original>
